<compile_context>
chip_gen: v7x
topology: tpu7x:2x2x1
jax: 0.10.0
libtpu: 0.0.40
codegen_flags: <defaults>
</compile_context>

<pallas_src>
import numpy as np

import jax
import jax.numpy as jnp
from jax import lax
from jax.experimental import pallas as pl
from jax.experimental.pallas import tpu as pltpu


# ----------------------------- problem sizes -------------------------------
NZ_ORIG, NX_ORIG = 48, 112        # un-padded model
NPML, NPAD = 8, 0                 # PML width / bottom pad
NZ = NZ_ORIG + 2 * NPML + NPAD    # 64  (multiple of 8   -> sublane friendly)
NX = NX_ORIG + 2 * NPML           # 128 (multiple of 128 -> lane friendly)
NT = 32                           # time steps (multiple of REC_CHUNK)
N_SHOTS = 2
DT = 1.0e-3                       # s
DH = 10.0                         # m
IZ_REC = NPML + 1                 # receiver row (record vz along all x)
SRC_Z = NPML + 2                  # source depth row (static)
REC_CHUNK = 8                     # seismogram row-buffer depth


# ------------- 4th-order staggered FD derivative matrices (host) ------------
def _staggered_matrices(n, dh):
    """Right-multiply convention:  (f @ D)[..., j] = staggered d/dx of f at j.

    4th-order staggered coefficients c1=9/8, c2=-1/24; out-of-range taps are
    truncated (non-periodic edges)."""
    c1, c2 = 9.0 / 8.0, -1.0 / 24.0
    Df = np.zeros((n, n), np.float32)   # forward-staggered
    Db = np.zeros((n, n), np.float32)   # backward-staggered
    for j in range(n):
        for idx, w in ((j + 1, c1), (j, -c1), (j + 2, c2), (j - 1, -c2)):
            if 0 <= idx < n:
                Df[idx, j] += w / dh
        for idx, w in ((j, c1), (j - 1, -c1), (j + 1, c2), (j - 2, -c2)):
            if 0 <= idx < n:
                Db[idx, j] += w / dh
    return Df, Db


def _block_diag(a, b):
    n0, n1 = a.shape[0] + b.shape[0], a.shape[1] + b.shape[1]
    out = np.zeros((n0, n1), np.float32)
    out[:a.shape[0], :a.shape[1]] = a
    out[a.shape[0]:, a.shape[1]:] = b
    return out


_DXF_NP, _DXB_NP = _staggered_matrices(NX, DH)      # x: f @ Dx   (right-mul)
_DZF_NP, _DZB_NP = _staggered_matrices(NZ, DH)      # z: Dz^T @ f (left-mul)

# One Dx block serves both phases:
#   concat([A | B]) @ DX_BLOCK = [ A @ Dxb | B @ Dxf ]
DX_BLOCK = jnp.asarray(_block_diag(_DXB_NP, _DXF_NP))          # (256, 256)
# One Dz block serves both phases:
#   DZ_BLOCK @ concat([A ; B]) = [ Dzf @ A ; Dzb @ B ]
DZ_BLOCK = jnp.asarray(_block_diag(np.ascontiguousarray(_DZF_NP.T),
                                   np.ascontiguousarray(_DZB_NP.T)))  # (128, 128)


# --------------------------- Pallas kernel 1 --------------------------------
# Lame parameter conversion (__init__ hot path).  Also emits the derived
# fields used by the propagation kernel (lam+2mu, buoyancy = DT/rho) so that
# forward() is a single pallas_call launch.
def lame_kernel(vp_ref, vs_ref, den_ref, lam_ref, mu_ref, lp2m_ref, buoy_ref):
    vp = vp_ref[...]
    vs = vs_ref[...]
    den = den_ref[...]
    vs2 = vs * vs
    mu = vs2 * den
    lam = (vp * vp - 2.0 * vs2) * den
    lam_ref[...] = lam
    mu_ref[...] = mu
    lp2m_ref[...] = lam + 2.0 * mu
    buoy_ref[...] = DT / den


def compute_lame(vp, vs, den):
    return pl.pallas_call(
        lame_kernel,
        out_shape=(
            jax.ShapeDtypeStruct((NZ, NX), jnp.float32),
            jax.ShapeDtypeStruct((NZ, NX), jnp.float32),
            jax.ShapeDtypeStruct((NZ, NX), jnp.float32),
            jax.ShapeDtypeStruct((NZ, NX), jnp.float32),
        ),
    )(vp, vs, den)


# --------------------------- Pallas kernel 2 --------------------------------
# Per-shot elastic velocity-stress wave propagation + receiver recording.
# Grid: one program per shot (parallel -> one shot per TC on v7x).
# Wavefields live in VMEM scratch; the time loop runs inside the kernel and
# all spatial derivatives are MXU matmuls against block-diagonal fused
# staggered-derivative matrices (4 matmuls per step).
def obscalc_kernel(stf_ref,                               # SMEM (n_shots, NT)
                   lam_ref, mu_ref, lp2m_ref, buoy_ref,   # VMEM (NZ, NX)
                   dzblk_ref,                             # VMEM (2NZ, 2NZ)
                   dxblk_ref,                             # VMEM (2NX, 2NX)
                   srcmask_ref,                           # VMEM (1, NZ, NX)
                   seis_ref,                              # VMEM (1, NT, NX) out
                   vx, vz, sxx, szz, sxz, recbuf):        # VMEM scratch
    s = pl.program_id(0)

    # fresh wavefields for this shot
    vx[...] = jnp.zeros_like(vx)
    vz[...] = jnp.zeros_like(vz)
    sxx[...] = jnp.zeros_like(sxx)
    szz[...] = jnp.zeros_like(szz)
    sxz[...] = jnp.zeros_like(sxz)

    def step(t, carry):
        # material fields reloaded from VMEM each step (cheap vld slots,
        # kept out of the vreg file across the loop -- do not hoist)
        lam = lam_ref[...]
        mu = mu_ref[...]
        lp2m = lp2m_ref[...]
        buoy = buoy_ref[...]                               # DT / rho

        vx_c = vx[...]
        vz_c = vz[...]

        # --- stress phase (inject + update, el_stress.cu core) ---
        # fused x-derivs: [ dx_b(vz) | dx_f(vx) ]
        dvdx = jnp.dot(jnp.concatenate([vz_c, vx_c], axis=-1), dxblk_ref[...],
                       preferred_element_type=jnp.float32)
        # fused z-derivs: [ dz_f(vz) ; dz_b(vx) ]
        dvdz = jnp.dot(dzblk_ref[...], jnp.concatenate([vz_c, vx_c], axis=0),
                       preferred_element_type=jnp.float32)
        dvz_dx = dvdx[:, :NX]
        dvx_dx = dvdx[:, NX:]
        dvz_dz = dvdz[:NZ, :]
        dvx_dz = dvdz[NZ:, :]

        # explosive source folded into the full-field stores
        src = srcmask_ref[0] * (stf_ref[s, t] * DT)        # (NZ, NX)
        sxx_n = sxx[...] + DT * (lp2m * dvx_dx + lam * dvz_dz) + src
        szz_n = szz[...] + DT * (lam * dvx_dx + lp2m * dvz_dz) + src
        sxz_n = sxz[...] + DT * (mu * (dvx_dz + dvz_dx))
        sxx[...] = sxx_n
        szz[...] = szz_n
        sxz[...] = sxz_n

        # --- velocity phase (el_velocity.cu core) ---
        # fused x-derivs: [ dx_b(sxx) | dx_f(sxz) ]
        dsdx = jnp.dot(jnp.concatenate([sxx_n, sxz_n], axis=-1), dxblk_ref[...],
                       preferred_element_type=jnp.float32)
        # fused z-derivs: [ dz_f(sxz) ; dz_b(szz) ]
        dsdz = jnp.dot(dzblk_ref[...], jnp.concatenate([sxz_n, szz_n], axis=0),
                       preferred_element_type=jnp.float32)
        vx_n = vx_c + buoy * (dsdx[:, :NX] + dsdz[:NZ, :])
        vz_n = vz_c + buoy * (dsdx[:, NX:] + dsdz[NZ:, :])
        vx[...] = vx_n
        vz[...] = vz_n

        # --- record vz at the receiver row from the in-register value;
        #     buffer REC_CHUNK rows then flush with a dense store ---
        row = t & (REC_CHUNK - 1)
        recbuf[pl.ds(row, 1), :] = vz_n[IZ_REC:IZ_REC + 1, :]

        @pl.when(row == REC_CHUNK - 1)
        def _():
            base = pl.multiple_of(t - (REC_CHUNK - 1), REC_CHUNK)
            seis_ref[0, pl.ds(base, REC_CHUNK), :] = recbuf[...]

        return carry

    # unroll=2 adopted only after the matmul fusion reduced live intermediates
    lax.fori_loop(0, NT, step, 0, unroll=2)


def obscalc(lam, mu, lp2m, buoy, stf, src_masks):
    n_shots = stf.shape[0]
    return pl.pallas_call(
        obscalc_kernel,
        out_shape=jax.ShapeDtypeStruct((n_shots, NT, NX), jnp.float32),
        grid=(n_shots,),
        in_specs=[
            pl.BlockSpec(memory_space=pltpu.MemorySpace.SMEM),      # stf scalars
            pl.BlockSpec((NZ, NX), lambda s: (0, 0)),               # Lambda
            pl.BlockSpec((NZ, NX), lambda s: (0, 0)),               # Mu
            pl.BlockSpec((NZ, NX), lambda s: (0, 0)),               # Lambda + 2 Mu
            pl.BlockSpec((NZ, NX), lambda s: (0, 0)),               # DT / Den
            pl.BlockSpec((2 * NZ, 2 * NZ), lambda s: (0, 0)),       # Dz block-diag
            pl.BlockSpec((2 * NX, 2 * NX), lambda s: (0, 0)),       # Dx block-diag
            pl.BlockSpec((1, NZ, NX), lambda s: (s, 0, 0)),         # source 2D mask
        ],
        out_specs=pl.BlockSpec((1, NT, NX), lambda s: (s, 0, 0)),
        scratch_shapes=[pltpu.VMEM((NZ, NX), jnp.float32)] * 5
                       + [pltpu.VMEM((REC_CHUNK, NX), jnp.float32)],
        compiler_params=pltpu.CompilerParams(
            dimension_semantics=("parallel",)),
    )(stf, lam, mu, lp2m, buoy, DZ_BLOCK, DX_BLOCK, src_masks)


# ------------------------------ glue (plain JAX) ----------------------------
def pad_model(vp, vs, den):
    # ft.padding: extend the model into the PML region (edge replicate) and
    # add nPad rows at the bottom.
    pad = ((NPML, NPML + NPAD), (NPML, NPML))
    return (jnp.pad(vp, pad, mode="edge"),
            jnp.pad(vs, pad, mode="edge"),
            jnp.pad(den, pad, mode="edge"))


class FWIObsCalc:
    """JAX/Pallas counterpart of FWI_obscalc."""

    def __init__(self, vp, vs, den, stf, src_masks):
        vp, vs, den = pad_model(vp, vs, den)
        # Pallas kernel: Lame params + derived fields (lam+2mu, DT/rho)
        self.Lambda, self.Mu, self.Lp2m, self.Buoy = compute_lame(vp, vs, den)
        self.Den = den
        self.Stf = stf
        self.src_masks = src_masks                  # (n_shots, NZ, NX)

    def forward(self, shot_ids):
        stf = self.Stf[shot_ids]
        masks = self.src_masks[shot_ids]
        # TODO(synk): the original forward writes observed data to disk via
        # the para_fname-configured CUDA op and returns None; here we return
        # the computed seismograms instead.
        return obscalc(self.Lambda, self.Mu, self.Lp2m, self.Buoy, stf, masks)

    __call__ = forward


# ----------------------------------- main -----------------------------------
if __name__ == "__main__":
    key = jax.random.PRNGKey(0)
    k1, k2, _ = jax.random.split(key, 3)

    # deterministic synthetic earth model (un-padded, nz_orig x nx_orig)
    vp = 2500.0 + 200.0 * jax.random.uniform(k1, (NZ_ORIG, NX_ORIG),
                                             dtype=jnp.float32)
    vs = vp / jnp.float32(1.732)
    den = 2200.0 + 50.0 * jax.random.uniform(k2, (NZ_ORIG, NX_ORIG),
                                             dtype=jnp.float32)

    # Ricker source time functions, one per shot
    t = jnp.arange(NT, dtype=jnp.float32) * DT
    f0, t0 = 15.0, 0.015
    arg = (jnp.pi * f0 * (t - t0)) ** 2
    ricker = (1.0 - 2.0 * arg) * jnp.exp(-arg)
    stf = jnp.stack([ricker, 0.8 * ricker]).astype(jnp.float32)  # (N_SHOTS, NT)

    # per-shot 2-D source masks: one-hot at (SRC_Z, src_x)
    src_xs = np.array([NPML + 30, NPML + 80], dtype=np.int32)
    zz = np.arange(NZ)
    xx = np.arange(NX)
    masks_np = np.stack([
        ((zz[:, None] == SRC_Z) & (xx[None, :] == src_xs[i])).astype(np.float32)
        for i in range(N_SHOTS)
    ])                                                # (N_SHOTS, NZ, NX)
    src_masks = jnp.asarray(masks_np)

    model = FWIObsCalc(vp, vs, den, stf, src_masks)

    shot_ids = jnp.array([0, 1], dtype=jnp.int32)
    seis = model(shot_ids)

    jax.block_until_ready(model.Lambda)
    jax.block_until_ready(model.Mu)
    seis = jax.block_until_ready(seis)

    assert seis.shape == (N_SHOTS, NT, NX)
    assert bool(jnp.all(jnp.isfinite(seis)))
    print("KERNEL_OK")
</pallas_src>

<mosaic_0001>
module attributes {stable_mosaic.version = 11 : i64} {
  func.func @lame_kernel(%arg0: memref<64x128xf32, #tpu.memory_space<vmem>>, %arg1: memref<64x128xf32, #tpu.memory_space<vmem>>, %arg2: memref<64x128xf32, #tpu.memory_space<vmem>>, %arg3: memref<64x128xf32, #tpu.memory_space<vmem>>, %arg4: memref<64x128xf32, #tpu.memory_space<vmem>>, %arg5: memref<64x128xf32, #tpu.memory_space<vmem>>, %arg6: memref<64x128xf32, #tpu.memory_space<vmem>>) attributes {dimension_semantics = [], scalar_prefetch = 0 : i64, scratch_operands = 0 : i64, tpu.core_type = #tpu.core_type<tc>} {
    %c0 = arith.constant 0 : index
    %c0_0 = arith.constant 0 : index
    %0 = vector.load %arg0[%c0, %c0_0] : memref<64x128xf32, #tpu.memory_space<vmem>>, vector<64x128xf32>
    %c0_1 = arith.constant 0 : index
    %c0_2 = arith.constant 0 : index
    %1 = vector.load %arg1[%c0_1, %c0_2] : memref<64x128xf32, #tpu.memory_space<vmem>>, vector<64x128xf32>
    %c0_3 = arith.constant 0 : index
    %c0_4 = arith.constant 0 : index
    %2 = vector.load %arg2[%c0_3, %c0_4] : memref<64x128xf32, #tpu.memory_space<vmem>>, vector<64x128xf32>
    %3 = arith.mulf %1, %1 : vector<64x128xf32>
    %4 = arith.mulf %3, %2 : vector<64x128xf32>
    %5 = arith.mulf %0, %0 : vector<64x128xf32>
    %cst = arith.constant 2.000000e+00 : f32
    %6 = vector.broadcast %cst : f32 to vector<64x128xf32>
    %7 = arith.mulf %6, %3 : vector<64x128xf32>
    %8 = arith.subf %5, %7 : vector<64x128xf32>
    %9 = arith.mulf %8, %2 : vector<64x128xf32>
    %c0_5 = arith.constant 0 : index
    %c0_6 = arith.constant 0 : index
    %10 = vector.load %arg3[%c0_5, %c0_6] : memref<64x128xf32, #tpu.memory_space<vmem>>, vector<64x128xf32>
    tpu.vector_store %arg3[%c0_5, %c0_6], %9 {strides = array<i32>} : memref<64x128xf32, #tpu.memory_space<vmem>>, vector<64x128xf32>,
    %c0_7 = arith.constant 0 : index
    %c0_8 = arith.constant 0 : index
    %11 = vector.load %arg4[%c0_7, %c0_8] : memref<64x128xf32, #tpu.memory_space<vmem>>, vector<64x128xf32>
    tpu.vector_store %arg4[%c0_7, %c0_8], %4 {strides = array<i32>} : memref<64x128xf32, #tpu.memory_space<vmem>>, vector<64x128xf32>,
    %cst_9 = arith.constant 2.000000e+00 : f32
    %12 = vector.broadcast %cst_9 : f32 to vector<64x128xf32>
    %13 = arith.mulf %12, %4 : vector<64x128xf32>
    %14 = arith.addf %9, %13 : vector<64x128xf32>
    %c0_10 = arith.constant 0 : index
    %c0_11 = arith.constant 0 : index
    %15 = vector.load %arg5[%c0_10, %c0_11] : memref<64x128xf32, #tpu.memory_space<vmem>>, vector<64x128xf32>
    tpu.vector_store %arg5[%c0_10, %c0_11], %14 {strides = array<i32>} : memref<64x128xf32, #tpu.memory_space<vmem>>, vector<64x128xf32>,
    %cst_12 = arith.constant 1.000000e-03 : f32
    %16 = vector.broadcast %cst_12 : f32 to vector<64x128xf32>
    %17 = arith.divf %16, %2 : vector<64x128xf32>
    %c0_13 = arith.constant 0 : index
    %c0_14 = arith.constant 0 : index
    %18 = vector.load %arg6[%c0_13, %c0_14] : memref<64x128xf32, #tpu.memory_space<vmem>>, vector<64x128xf32>
    tpu.vector_store %arg6[%c0_13, %c0_14], %17 {strides = array<i32>} : memref<64x128xf32, #tpu.memory_space<vmem>>, vector<64x128xf32>,
    return
  }
}

</mosaic_0001>

<llo_original>
// kernel: tpu_custom_call.1
$region0: #{tpu_custom_call.1}
  #allocation0 [shape = 'u32[]', space=smem, size = 0x4, offset = 0x4, fixed_abs, tag = 'smem constant byte address 0x4 - core index']
  #allocation1 [shape = 'u32[144,128]{1,0:T(1,128)}', space=vmem, size = 0x12000, scoped, tag = 'internal scratch']
  %s0 = inlined_call_operand.hbm [shape: f32[64,128], index: 0, kind: input, shape index: {}]
  %s1 = inlined_call_operand.hbm [shape: f32[64,128], index: 1, kind: input, shape index: {}]
  %s2 = inlined_call_operand.hbm [shape: f32[64,128], index: 2, kind: input, shape index: {}]
  %s3 = inlined_call_operand.hbm [shape: f32[64,128], index: 3, kind: output, shape index: {0}]
  %s4 = inlined_call_operand.hbm [shape: f32[64,128], index: 4, kind: output, shape index: {1}]
  %s5 = inlined_call_operand.hbm [shape: f32[64,128], index: 5, kind: output, shape index: {2}]
  %s6 = inlined_call_operand.hbm [shape: f32[64,128], index: 6, kind: output, shape index: {3}]
  %7 = xla_tuple %s3, %s4, %s5, %s6
  %s8 = sld [smem:[#allocation0]]
  $region58: #{tpu_custom_call.1} parent=0
    _
  %s10 = ssub.s32 1, %s8
  %s11 = scalar_select 0, %s10, %s8
  $region1: #{tpu_custom_call.1} parent=0
    #allocation2 [shape = 'u8[32768]{0}', space=vmem, size = 0x8000, scoped, tag = 'input window, operand 0, single buffered']
    #allocation3 [shape = 's32[1]{0}', space=sflag, size = 0x4, scoped, tag = 'scoped memory for tpu_custom_call.1']
    #allocation4 [shape = 's32[1]{0}', space=sflag, size = 0x4, scoped, tag = 'scoped memory for tpu_custom_call.1']
    #allocation5 [shape = 'u8[32768]{0}', space=vmem, size = 0x8000, scoped, tag = 'input window, operand 1, single buffered']
    #allocation6 [shape = 's32[1]{0}', space=sflag, size = 0x4, scoped, tag = 'scoped memory for tpu_custom_call.1']
    #allocation7 [shape = 'u8[32768]{0}', space=vmem, size = 0x8000, scoped, tag = 'input window, operand 2, single buffered']
    #allocation8 [shape = 'u8[32768]{0}', space=vmem, size = 0x8000, scoped, tag = 'output window, operand 0, single buffered']
    #allocation9 [shape = 'u8[32768]{0}', space=vmem, size = 0x8000, scoped, tag = 'output window, operand 1, single buffered']
    #allocation10 [shape = 's32[1]{0}', space=sflag, size = 0x4, scoped, tag = 'scoped memory for tpu_custom_call.1']
    #allocation11 [shape = 'u8[32768]{0}', space=vmem, size = 0x8000, scoped, tag = 'output window, operand 2, single buffered']
    #allocation12 [shape = 'u8[32768]{0}', space=vmem, size = 0x8000, scoped, tag = 'output window, operand 3, single buffered']
    #allocation13 [shape = 's32[1]{0}', space=sflag, size = 0x4, scoped, tag = 'scoped memory for tpu_custom_call.1']
    %12 = vsyncpa [#allocation3], 0
    %13 = vsyncpa [#allocation6], 0
    %14 = vsyncpa [#allocation4], 0
    %15 = vsyncpa [#allocation10], 0
    %16 = vsyncpa [#allocation13], 0
    // Predicated region
    $region2: #{tpu_custom_call.1} parent=1 // pred_check
      _
    $region3: #{tpu_custom_call.1} parent=1 // pred_check_branch
      %18 = sbr.rel (0) target = $region5
    $region4: #{tpu_custom_call.1} parent=1 // pred_region
      %s20 = ssub.s32 1024, 1024
      %21 = vsyncadd [#allocation3], %s20
      %s22 = sshll.u32 [#allocation2], 4
      %s23 = int_to_ptr.vmem [resolvable:$true] %s22
      %28 = dma.hbm_to_vmem [thread:$0]  %s0, 1024, %s23, [#allocation3], 128, 128, 8
    $region5: #{tpu_custom_call.1} parent=1 // pred_fallthru
      _
    // Predicated region
    $region6: #{tpu_custom_call.1} parent=1 // pred_check
      _
    $region7: #{tpu_custom_call.1} parent=1 // pred_check_branch
      %30 = sbr.rel (0) target = $region9
    $region8: #{tpu_custom_call.1} parent=1 // pred_region
      %s32 = ssub.s32 1024, 1024
      %33 = vsyncadd [#allocation6], %s32
      %s34 = sshll.u32 [#allocation5], 4
      %s35 = int_to_ptr.vmem [resolvable:$true] %s34
      %40 = dma.hbm_to_vmem [thread:$0]  %s1, 1024, %s35, [#allocation6], 128, 128, 8
    $region9: #{tpu_custom_call.1} parent=1 // pred_fallthru
      _
    // Predicated region
    $region10: #{tpu_custom_call.1} parent=1 // pred_check
      _
    $region11: #{tpu_custom_call.1} parent=1 // pred_check_branch
      %42 = sbr.rel (0) target = $region13
    $region12: #{tpu_custom_call.1} parent=1 // pred_region
      %s44 = ssub.s32 1024, 1024
      %45 = vsyncadd [#allocation6], %s44
      %s46 = sshll.u32 [#allocation7], 4
      %s47 = int_to_ptr.vmem [resolvable:$true] %s46
      %52 = dma.hbm_to_vmem [thread:$0]  %s2, 1024, %s47, [#allocation6], 128, 128, 8
    $region13: #{tpu_custom_call.1} parent=1 // pred_fallthru
      _
    // Predicated region
    $region14: #{tpu_custom_call.1} parent=1 // pred_check
      _
    $region15: #{tpu_custom_call.1} parent=1 // pred_check_branch
      %54 = sbr.rel (0) target = $region17
    $region16: #{tpu_custom_call.1} parent=1 // pred_region
      %55 = dma.done [#allocation3], 1024
    $region17: #{tpu_custom_call.1} parent=1 // pred_fallthru
      _
    // Predicated region
    $region18: #{tpu_custom_call.1} parent=1 // pred_check
      _
    $region19: #{tpu_custom_call.1} parent=1 // pred_check_branch
      %57 = sbr.rel (0) target = $region21
    $region20: #{tpu_custom_call.1} parent=1 // pred_region
      %58 = dma.done [#allocation6], 1024
    $region21: #{tpu_custom_call.1} parent=1 // pred_fallthru
      _
    // Predicated region
    $region22: #{tpu_custom_call.1} parent=1 // pred_check
      _
    $region23: #{tpu_custom_call.1} parent=1 // pred_check_branch
      %60 = sbr.rel (0) target = $region25
    $region24: #{tpu_custom_call.1} parent=1 // pred_region
      %61 = dma.done [#allocation6], 1024
    $region25: #{tpu_custom_call.1} parent=1 // pred_fallthru
      _
    %v62 = vld [vmem:[#allocation2] sm:$0xff]
    %v63 = vld [vmem:[#allocation2 + $0x8] sm:$0xff]
    %v64 = vld [vmem:[#allocation2 + $0x10] sm:$0xff]
    %v65 = vld [vmem:[#allocation2 + $0x18] sm:$0xff]
    %v66 = vld [vmem:[#allocation2 + $0x20] sm:$0xff]
    %v67 = vld [vmem:[#allocation2 + $0x28] sm:$0xff]
    %v68 = vld [vmem:[#allocation2 + $0x30] sm:$0xff]
    %v69 = vld [vmem:[#allocation2 + $0x38] sm:$0xff]
    %v70 = vld [vmem:[#allocation5] sm:$0xff]
    %v71 = vld [vmem:[#allocation5 + $0x8] sm:$0xff]
    %v72 = vld [vmem:[#allocation5 + $0x10] sm:$0xff]
    %v73 = vld [vmem:[#allocation5 + $0x18] sm:$0xff]
    %v74 = vld [vmem:[#allocation5 + $0x20] sm:$0xff]
    %v75 = vld [vmem:[#allocation5 + $0x28] sm:$0xff]
    %v76 = vld [vmem:[#allocation5 + $0x30] sm:$0xff]
    %v77 = vld [vmem:[#allocation5 + $0x38] sm:$0xff]
    %v78 = vld [vmem:[#allocation7] sm:$0xff]
    %v79 = vld [vmem:[#allocation7 + $0x8] sm:$0xff]
    %v80 = vld [vmem:[#allocation7 + $0x10] sm:$0xff]
    %v81 = vld [vmem:[#allocation7 + $0x18] sm:$0xff]
    %v82 = vld [vmem:[#allocation7 + $0x20] sm:$0xff]
    %v83 = vld [vmem:[#allocation7 + $0x28] sm:$0xff]
    %v84 = vld [vmem:[#allocation7 + $0x30] sm:$0xff]
    %v85 = vld [vmem:[#allocation7 + $0x38] sm:$0xff]
    %v86 = vmul.f32 %v70, %v70
    %v87 = vmul.f32 %v71, %v71
    %v88 = vmul.f32 %v72, %v72
    %v89 = vmul.f32 %v73, %v73
    %v90 = vmul.f32 %v74, %v74
    %v91 = vmul.f32 %v75, %v75
    %v92 = vmul.f32 %v76, %v76
    %v93 = vmul.f32 %v77, %v77
    %v94 = vmul.f32 %v86, %v78
    %v95 = vmul.f32 %v87, %v79
    %v96 = vmul.f32 %v88, %v80
    %v97 = vmul.f32 %v89, %v81
    %v98 = vmul.f32 %v90, %v82
    %v99 = vmul.f32 %v91, %v83
    %v100 = vmul.f32 %v92, %v84
    %v101 = vmul.f32 %v93, %v85
    %v102 = vmul.f32 %v62, %v62
    %v103 = vmul.f32 %v63, %v63
    %v104 = vmul.f32 %v64, %v64
    %v105 = vmul.f32 %v65, %v65
    %v106 = vmul.f32 %v66, %v66
    %v107 = vmul.f32 %v67, %v67
    %v108 = vmul.f32 %v68, %v68
    %v109 = vmul.f32 %v69, %v69
    %v110 = vmul.f32 %v86, 2.0
    %v111 = vmul.f32 %v87, 2.0
    %v112 = vmul.f32 %v88, 2.0
    %v113 = vmul.f32 %v89, 2.0
    %v114 = vmul.f32 %v90, 2.0
    %v115 = vmul.f32 %v91, 2.0
    %v116 = vmul.f32 %v92, 2.0
    %v117 = vmul.f32 %v93, 2.0
    %v118 = vsub.f32 %v102, %v110
    %v119 = vsub.f32 %v103, %v111
    %v120 = vsub.f32 %v104, %v112
    %v121 = vsub.f32 %v105, %v113
    %v122 = vsub.f32 %v106, %v114
    %v123 = vsub.f32 %v107, %v115
    %v124 = vsub.f32 %v108, %v116
    %v125 = vsub.f32 %v109, %v117
    %v126 = vmul.f32 %v118, %v78
    %v127 = vmul.f32 %v119, %v79
    %v128 = vmul.f32 %v120, %v80
    %v129 = vmul.f32 %v121, %v81
    %v130 = vmul.f32 %v122, %v82
    %v131 = vmul.f32 %v123, %v83
    %v132 = vmul.f32 %v124, %v84
    %v133 = vmul.f32 %v125, %v85
    %134 = vst [vmem:[#allocation8] sm:$0xff] %v126
    %135 = vst [vmem:[#allocation8 + $0x8] sm:$0xff] %v127
    %136 = vst [vmem:[#allocation8 + $0x10] sm:$0xff] %v128
    %137 = vst [vmem:[#allocation8 + $0x18] sm:$0xff] %v129
    %138 = vst [vmem:[#allocation8 + $0x20] sm:$0xff] %v130
    %139 = vst [vmem:[#allocation8 + $0x28] sm:$0xff] %v131
    %140 = vst [vmem:[#allocation8 + $0x30] sm:$0xff] %v132
    %141 = vst [vmem:[#allocation8 + $0x38] sm:$0xff] %v133
    %142 = vst [vmem:[#allocation9] sm:$0xff] %v94
    %143 = vst [vmem:[#allocation9 + $0x8] sm:$0xff] %v95
    %144 = vst [vmem:[#allocation9 + $0x10] sm:$0xff] %v96
    %145 = vst [vmem:[#allocation9 + $0x18] sm:$0xff] %v97
    %146 = vst [vmem:[#allocation9 + $0x20] sm:$0xff] %v98
    %147 = vst [vmem:[#allocation9 + $0x28] sm:$0xff] %v99
    %148 = vst [vmem:[#allocation9 + $0x30] sm:$0xff] %v100
    %149 = vst [vmem:[#allocation9 + $0x38] sm:$0xff] %v101
    %v150 = vmul.f32 %v94, 2.0
    %v151 = vmul.f32 %v95, 2.0
    %v152 = vmul.f32 %v96, 2.0
    %v153 = vmul.f32 %v97, 2.0
    %v154 = vmul.f32 %v98, 2.0
    %v155 = vmul.f32 %v99, 2.0
    %v156 = vmul.f32 %v100, 2.0
    %v157 = vmul.f32 %v101, 2.0
    %v158 = vadd.f32 %v126, %v150
    %v159 = vadd.f32 %v127, %v151
    %v160 = vadd.f32 %v128, %v152
    %v161 = vadd.f32 %v129, %v153
    %v162 = vadd.f32 %v130, %v154
    %v163 = vadd.f32 %v131, %v155
    %v164 = vadd.f32 %v132, %v156
    %v165 = vadd.f32 %v133, %v157
    %166 = vst [vmem:[#allocation11] sm:$0xff] %v158
    %167 = vst [vmem:[#allocation11 + $0x8] sm:$0xff] %v159
    %168 = vst [vmem:[#allocation11 + $0x10] sm:$0xff] %v160
    %169 = vst [vmem:[#allocation11 + $0x18] sm:$0xff] %v161
    %170 = vst [vmem:[#allocation11 + $0x20] sm:$0xff] %v162
    %171 = vst [vmem:[#allocation11 + $0x28] sm:$0xff] %v163
    %172 = vst [vmem:[#allocation11 + $0x30] sm:$0xff] %v164
    %173 = vst [vmem:[#allocation11 + $0x38] sm:$0xff] %v165
    %v174 = vrcp.pop %v78
    %v175 = vmul.f32 0.001, %v174
    %v176 = vrcp.pop %v79
    %v177 = vmul.f32 0.001, %v176
    %v178 = vrcp.pop %v80
    %v179 = vmul.f32 0.001, %v178
    %v180 = vrcp.pop %v81
    %v181 = vmul.f32 0.001, %v180
    %v182 = vrcp.pop %v82
    %v183 = vmul.f32 0.001, %v182
    %v184 = vrcp.pop %v83
    %v185 = vmul.f32 0.001, %v184
    %v186 = vrcp.pop %v84
    %v187 = vmul.f32 0.001, %v186
    %v188 = vrcp.pop %v85
    %v189 = vmul.f32 0.001, %v188
    %190 = vst [vmem:[#allocation12] sm:$0xff] %v175
    %191 = vst [vmem:[#allocation12 + $0x8] sm:$0xff] %v177
    %192 = vst [vmem:[#allocation12 + $0x10] sm:$0xff] %v179
    %193 = vst [vmem:[#allocation12 + $0x18] sm:$0xff] %v181
    %194 = vst [vmem:[#allocation12 + $0x20] sm:$0xff] %v183
    %195 = vst [vmem:[#allocation12 + $0x28] sm:$0xff] %v185
    %196 = vst [vmem:[#allocation12 + $0x30] sm:$0xff] %v187
    %197 = vst [vmem:[#allocation12 + $0x38] sm:$0xff] %v189
    // Predicated region
    $region26: #{tpu_custom_call.1} parent=1 // pred_check
      _
    $region27: #{tpu_custom_call.1} parent=1 // pred_check_branch
      %199 = sbr.rel (0) target = $region29
    $region28: #{tpu_custom_call.1} parent=1 // pred_region
      %s201 = ssub.s32 1024, 1024
      %202 = vsyncadd [#allocation4], %s201
      %s203 = sshll.u32 [#allocation8], 4
      %s204 = int_to_ptr.vmem [resolvable:$true] %s203
      %209 = dma.vmem_to_hbm [thread:$0]  %s204, 1024, %s3, [#allocation4], 128, 128, 8
    $region29: #{tpu_custom_call.1} parent=1 // pred_fallthru
      _
    // Predicated region
    $region30: #{tpu_custom_call.1} parent=1 // pred_check
      _
    $region31: #{tpu_custom_call.1} parent=1 // pred_check_branch
      %211 = sbr.rel (0) target = $region33
    $region32: #{tpu_custom_call.1} parent=1 // pred_region
      %s213 = ssub.s32 1024, 1024
      %214 = vsyncadd [#allocation10], %s213
      %s215 = sshll.u32 [#allocation9], 4
      %s216 = int_to_ptr.vmem [resolvable:$true] %s215
      %221 = dma.vmem_to_hbm [thread:$0]  %s216, 1024, %s4, [#allocation10], 128, 128, 8
    $region33: #{tpu_custom_call.1} parent=1 // pred_fallthru
      _
    // Predicated region
    $region34: #{tpu_custom_call.1} parent=1 // pred_check
      _
    $region35: #{tpu_custom_call.1} parent=1 // pred_check_branch
      %223 = sbr.rel (0) target = $region37
    $region36: #{tpu_custom_call.1} parent=1 // pred_region
      %s225 = ssub.s32 1024, 1024
      %226 = vsyncadd [#allocation10], %s225
      %s227 = sshll.u32 [#allocation11], 4
      %s228 = int_to_ptr.vmem [resolvable:$true] %s227
      %233 = dma.vmem_to_hbm [thread:$0]  %s228, 1024, %s5, [#allocation10], 128, 128, 8
    $region37: #{tpu_custom_call.1} parent=1 // pred_fallthru
      _
    // Predicated region
    $region38: #{tpu_custom_call.1} parent=1 // pred_check
      _
    $region39: #{tpu_custom_call.1} parent=1 // pred_check_branch
      %235 = sbr.rel (0) target = $region41
    $region40: #{tpu_custom_call.1} parent=1 // pred_region
      %s237 = ssub.s32 1024, 1024
      %238 = vsyncadd [#allocation13], %s237
      %s239 = sshll.u32 [#allocation12], 4
      %s240 = int_to_ptr.vmem [resolvable:$true] %s239
      %245 = dma.vmem_to_hbm [thread:$0]  %s240, 1024, %s6, [#allocation13], 128, 128, 8
    $region41: #{tpu_custom_call.1} parent=1 // pred_fallthru
      _
    // Predicated region
    $region42: #{tpu_custom_call.1} parent=1 // pred_check
      _
    $region43: #{tpu_custom_call.1} parent=1 // pred_check_branch
      %247 = sbr.rel (0) target = $region45
    $region44: #{tpu_custom_call.1} parent=1 // pred_region
      %248 = dma.done [#allocation4], 1024
    $region45: #{tpu_custom_call.1} parent=1 // pred_fallthru
      _
    // Predicated region
    $region46: #{tpu_custom_call.1} parent=1 // pred_check
      _
    $region47: #{tpu_custom_call.1} parent=1 // pred_check_branch
      %250 = sbr.rel (0) target = $region49
    $region48: #{tpu_custom_call.1} parent=1 // pred_region
      %251 = dma.done [#allocation10], 1024
    $region49: #{tpu_custom_call.1} parent=1 // pred_fallthru
      _
    // Predicated region
    $region50: #{tpu_custom_call.1} parent=1 // pred_check
      _
    $region51: #{tpu_custom_call.1} parent=1 // pred_check_branch
      %253 = sbr.rel (0) target = $region53
    $region52: #{tpu_custom_call.1} parent=1 // pred_region
      %254 = dma.done [#allocation10], 1024
    $region53: #{tpu_custom_call.1} parent=1 // pred_fallthru
      _
    // Predicated region
    $region54: #{tpu_custom_call.1} parent=1 // pred_check
      _
    $region55: #{tpu_custom_call.1} parent=1 // pred_check_branch
      %256 = sbr.rel (0) target = $region57
    $region56: #{tpu_custom_call.1} parent=1 // pred_region
      %257 = dma.done [#allocation13], 1024
    $region57: #{tpu_custom_call.1} parent=1 // pred_fallthru
      _
    %258 = vsyncpa [#allocation3], 1
    %259 = vsyncpa [#allocation6], 1
    %260 = vsyncpa [#allocation4], 1
    %261 = vsyncpa [#allocation10], 1
    %262 = vsyncpa [#allocation13], 1

</llo_original>
